<compile_context>
chip_gen: v7x
topology: tpu7x:2x2x1
jax: 0.10.0
libtpu: 0.0.40
codegen_flags: <defaults>
</compile_context>

<pallas_src>
import jax
import jax.numpy as jnp
from jax.experimental import pallas as pl
from jax.experimental.pallas import tpu as pltpu

WIDTH_RP = 7   # forced in the torch __init__
DEPTH_RP = 3   # forced in the torch __init__
N_LAYERS = DEPTH_RP + 2  # start + 3 hidden + end


def _round_up(a, b):
    return ((a + b - 1) // b) * b


# ---------------------------------------------------------------------------
# Pallas kernel: per-edge contributions (the hot path)
# ---------------------------------------------------------------------------
def rp_edge_kernel(x_ref, e01_ref,
                   w0f_ref, w0r_ref, b0_ref,
                   wh_ref, bh_ref,
                   we_ref, be_ref,
                   out_ref):
    # x_ref   : (2M, TE)          node scores, features on sublanes, edges on lanes
    # e01_ref : (1, TE)           (sign + 1) / 2 per edge
    # w0f_ref : (2W, 2M)          [R_start.T ; P_start.T]
    # w0r_ref : (2W, 2M)          same, with input columns reversed (rev direction)
    # b0_ref  : (2W, 1)
    # wh_ref  : (DEPTH, 2W, 2W)   block-diag(R_hid.T, P_hid.T)
    # bh_ref  : (DEPTH, 2W, 1)
    # we_ref  : (2M, 2W)          block-diag(R_end.T[:M], P_end.T[:M])
    # be_ref  : (2M, 1)
    # out_ref : (2M, TE)          rows 0..M-1: contribute[:, :M].T
    #                             rows M..2M-1: contribute_rev[:, :M].T
    x = x_ref[...]
    two_m, te = x.shape
    m = two_m // 2
    f32 = jnp.float32

    b0 = b0_ref[...]
    # fused first layer: forward features and (weight-folded) reversed features
    h_f = jnp.dot(w0f_ref[...], x, preferred_element_type=f32) + b0   # (2W, TE)
    h_r = jnp.dot(w0r_ref[...], x, preferred_element_type=f32) + b0   # (2W, TE)
    h = jnp.maximum(jnp.concatenate([h_f, h_r], axis=1), 0.0)         # (2W, 2TE)

    # fused (block-diagonal R/P) hidden layers
    for d in range(DEPTH_RP):
        h = jnp.maximum(
            jnp.dot(wh_ref[d], h, preferred_element_type=f32) + bh_ref[d], 0.0)

    # fused last layer, only the first M outputs of each head
    y = jnp.dot(we_ref[...], h, preferred_element_type=f32) + be_ref[...]  # (2M, 2TE)

    e01 = e01_ref[...]           # (1, TE)
    one_m_e01 = 1.0 - e01
    sig = jax.nn.sigmoid

    rew_f = y[:m, :te]
    pen_f = y[m:, :te]
    rew_r = y[:m, te:]
    pen_r = y[m:, te:]

    c_fwd = e01 * sig(rew_f) - one_m_e01 * sig(pen_f)        # (M, TE)
    c_rev = one_m_e01 * sig(rew_r) - e01 * sig(pen_r)        # (M, TE)
    out_ref[...] = jnp.concatenate([c_fwd, c_rev], axis=0)   # single full-block store


def rp_edge_contributions(ns_t, e01_row, packed, *, te):
    """Pallas call over edge tiles. ns_t: (2M, E_pad) f32, e01_row: (1, E_pad)."""
    two_m, e_pad = ns_t.shape
    w0f, w0r, b0, wh, bh, we, be = packed
    assert e_pad % te == 0 and te % 128 == 0

    grid = (e_pad // te,)
    in_specs = [
        pl.BlockSpec((two_m, te), lambda i: (0, i)),        # node scores tile
        pl.BlockSpec((1, te), lambda i: (0, i)),            # e01 tile (lane-dense)
        pl.BlockSpec(w0f.shape, lambda i: (0, 0)),          # fused params: whole array,
        pl.BlockSpec(w0r.shape, lambda i: (0, 0)),          # constant index map -> kept
        pl.BlockSpec(b0.shape, lambda i: (0, 0)),           # resident in VMEM
        pl.BlockSpec(wh.shape, lambda i: (0, 0, 0)),
        pl.BlockSpec(bh.shape, lambda i: (0, 0, 0)),
        pl.BlockSpec(we.shape, lambda i: (0, 0)),
        pl.BlockSpec(be.shape, lambda i: (0, 0)),
    ]
    out_specs = pl.BlockSpec((two_m, te), lambda i: (0, i))
    out_shape = jax.ShapeDtypeStruct((two_m, e_pad), jnp.float32)

    return pl.pallas_call(
        rp_edge_kernel,
        grid=grid,
        in_specs=in_specs,
        out_specs=out_specs,
        out_shape=out_shape,
        compiler_params=pltpu.CompilerParams(
            dimension_semantics=("parallel",)),   # shards edge tiles across TCs (v7x)
    )(ns_t, e01_row, w0f, w0r, b0, wh, bh, we, be)


# ---------------------------------------------------------------------------
# Parameter packing (wrapper-side, plain JAX; done once)
# ---------------------------------------------------------------------------
def pack_rp_params(r_params, p_params, M):
    """Fuse R and P parameters block-diagonally; fold the feature reversal into
    a second copy of the first-layer weights; keep only the first M outputs of
    the last layer. Params are stored as (in, out) / (1, out)."""
    W = WIDTH_RP * M

    (rw0, rb0), (pw0, pb0) = r_params[0], p_params[0]
    w0f = jnp.concatenate([rw0.T, pw0.T], axis=0)                     # (2W, 2M)
    w0r = w0f[:, ::-1]                                                # reversed input features
    b0 = jnp.concatenate([rb0.reshape(-1), pb0.reshape(-1)]).reshape(2 * W, 1)

    wh, bh = [], []
    z = jnp.zeros((W, W), jnp.float32)
    for d in range(1, 1 + DEPTH_RP):
        rw, rb = r_params[d]
        pw, pb = p_params[d]
        wh.append(jnp.block([[rw.T, z], [z, pw.T]]))                  # (2W, 2W)
        bh.append(jnp.concatenate([rb.reshape(-1), pb.reshape(-1)]).reshape(2 * W, 1))
    wh = jnp.stack(wh)                                                # (DEPTH, 2W, 2W)
    bh = jnp.stack(bh)                                                # (DEPTH, 2W, 1)

    rwe, rbe = r_params[-1]
    pwe, pbe = p_params[-1]
    zM = jnp.zeros((M, W), jnp.float32)
    we = jnp.block([[rwe[:, :M].T, zM], [zM, pwe[:, :M].T]])          # (2M, 2W)
    be = jnp.concatenate([rbe[0, :M], pbe[0, :M]]).reshape(2 * M, 1)

    return (w0f, w0r, b0, wh, bh, we, be)


# ---------------------------------------------------------------------------
# Full forward pass
# ---------------------------------------------------------------------------
def rp_layers_forward(score, edges, r_params, p_params, M, norm_factor=2.0, te_max=512):
    """RP_layers.forward. score: (N, 1) f32; edges: (E, 2M+1) f32
    (first 2M cols node indices, last col +/-1 edge label)."""
    N = score.shape[0]
    E = edges.shape[0]
    two_m = 2 * M
    assert E >= 1

    edge_nodes = edges[:, :two_m].astype(jnp.int32)    # (E, 2M)
    sign = edges[:, -1]                                # (E,)

    # Gather node features (data-dependent, plain JAX glue), transposed to
    # lane-dense layout: features on sublanes, edges on lanes.
    ns_t = score[edge_nodes.T, 0]                      # (2M, E)
    e01 = (sign + 1.0) * 0.5                           # (E,)

    # Pad the edge axis to a multiple of the tile (tile is 128-aligned).
    # te_max: sweep 512-2048 for large E; keep >= ~8-16 grid steps on v7x.
    te = max(128, min(te_max, _round_up(E, 128)))
    e_pad = _round_up(E, te)
    pad = e_pad - E
    ns_t = jnp.pad(ns_t, ((0, 0), (0, pad)))
    e01_row = jnp.pad(e01, (0, pad)).reshape(1, e_pad)

    packed = pack_rp_params(r_params, p_params, M)
    contrib = rp_edge_contributions(ns_t, e01_row, packed, te=te)   # (2M, E_pad)

    # Scatter-add aggregation (index_add_) — data-dependent indices kept in
    # plain JAX, but fused into ONE scatter over all 2M endpoint columns with
    # the contribution and the degree increment packed side by side.
    # TODO(synk): scatter-add with runtime indices kept outside the Pallas kernel.
    valid = (jnp.arange(e_pad) < E).astype(jnp.float32)               # mask padded edges
    vals = contrib.T * valid[:, None]                                 # (E_pad, 2M)
    ones = jnp.broadcast_to(valid[:, None], (e_pad, two_m))
    idx = jnp.pad(edge_nodes, ((0, pad), (0, 0))).reshape(-1)         # (E_pad*2M,)
    upd = jnp.stack([vals.reshape(-1), ones.reshape(-1)], axis=-1)    # (E_pad*2M, 2)
    acc = jnp.zeros((N, 2), jnp.float32).at[idx].add(upd)
    rp_agg = acc[:, :1]
    degree = acc[:, 1:]

    rp_agg = rp_agg / (degree.max() / norm_factor)
    out = score + rp_agg
    out = out - out.mean()
    out = out / jnp.sqrt(jnp.sum(out ** 2, axis=0))   # == score.norm(dim=0)
    return out


# ---------------------------------------------------------------------------
# Reference (pure JAX, mirrors the torch module) and parameter init
# ---------------------------------------------------------------------------
def rp_layers_reference(score, edges, r_params, p_params, M, norm_factor=2.0):
    two_m = 2 * M
    N = score.shape[0]
    edge_nodes = edges[:, :two_m].astype(jnp.int32)
    node_score = score[edge_nodes, 0]
    node_score_rev = node_score[:, ::-1]

    def mlp(x, params):
        h = x
        for i, (w, b) in enumerate(params):
            h = jnp.dot(h, w, precision=jax.lax.Precision.HIGHEST) + b
            if i < len(params) - 1:
                h = jnp.maximum(h, 0.0)
        return h

    reward = mlp(node_score, r_params)
    penalty = mlp(node_score, p_params)
    reward_rev = mlp(node_score_rev, r_params)
    penalty_rev = mlp(node_score_rev, p_params)
    e01 = (edges[:, -1:] + 1.0) / 2.0
    contribute = e01 * jax.nn.sigmoid(reward) - (1 - e01) * jax.nn.sigmoid(penalty)
    contribute_rev = (1 - e01) * jax.nn.sigmoid(reward_rev) - e01 * jax.nn.sigmoid(penalty_rev)

    rp = jnp.zeros((N, 1), jnp.float32)
    deg = jnp.zeros((N, 1), jnp.float32)
    for m in range(M):
        rp = rp.at[edge_nodes[:, m], 0].add(contribute[:, m])
        rp = rp.at[edge_nodes[:, M + m], 0].add(contribute_rev[:, m])
        deg = deg.at[edge_nodes[:, m], 0].add(1.0)
        deg = deg.at[edge_nodes[:, M + m], 0].add(1.0)
    rp = rp / (deg.max() / norm_factor)
    out = score + rp
    out = out - out.mean()
    return out / jnp.sqrt(jnp.sum(out ** 2, axis=0))


def make_mlp_params(key, M):
    """Deterministic parameter init matching the torch layer shapes
    (stored transposed: (in, out))."""
    width = WIDTH_RP * M
    dims = [(2 * M, width)] + [(width, width)] * DEPTH_RP + [(width, 2 * M)]
    params = []
    ks = jax.random.split(key, 2 * len(dims))
    for i, (din, dout) in enumerate(dims):
        bound = 1.0 / jnp.sqrt(float(din))
        w = jax.random.uniform(ks[2 * i], (din, dout), jnp.float32, -bound, bound)
        b = jax.random.uniform(ks[2 * i + 1], (1, dout), jnp.float32, -bound, bound)
        params.append((w, b))
    return params


if __name__ == "__main__":
    key = jax.random.PRNGKey(0)
    k_r, k_p, k_score, k_idx, k_sign = jax.random.split(key, 5)

    M = 4          # -> 2M = 8 features per edge, fused hidden width = 56
    N = 16         # number of nodes
    E = 16         # number of edges (padded to 128 internally)

    r_params = make_mlp_params(k_r, M)
    p_params = make_mlp_params(k_p, M)

    score = jax.random.normal(k_score, (N, 1), jnp.float32)
    node_idx = jax.random.randint(k_idx, (E, 2 * M), 0, N)
    sign = jnp.where(jax.random.bernoulli(k_sign, 0.5, (E, 1)), 1.0, -1.0)
    edges = jnp.concatenate([node_idx.astype(jnp.float32), sign], axis=1)  # (E, 2M+1)

    out = rp_layers_forward(score, edges, r_params, p_params, M)
    out = jax.block_until_ready(out)
    assert out.shape == (N, 1)

    ref = jax.block_until_ready(rp_layers_reference(score, edges, r_params, p_params, M))
    err = float(jnp.max(jnp.abs(out - ref)))
    assert err < 2e-3, f"mismatch vs reference: max abs err = {err}"

    print("KERNEL_OK")
</pallas_src>

<mosaic_0001>
module attributes {stable_mosaic.version = 11 : i64} {
  func.func @rp_edge_kernel(%arg0: i32, %arg1: memref<8x128xf32, #tpu.memory_space<vmem>>, %arg2: memref<1x128xf32, #tpu.memory_space<vmem>>, %arg3: memref<56x8xf32, #tpu.memory_space<vmem>>, %arg4: memref<56x8xf32, #tpu.memory_space<vmem>>, %arg5: memref<56x1xf32, #tpu.memory_space<vmem>>, %arg6: memref<3x56x56xf32, #tpu.memory_space<vmem>>, %arg7: memref<3x56x1xf32, #tpu.memory_space<vmem>>, %arg8: memref<8x56xf32, #tpu.memory_space<vmem>>, %arg9: memref<8x1xf32, #tpu.memory_space<vmem>>, %arg10: memref<8x128xf32, #tpu.memory_space<vmem>>) attributes {dimension_semantics = [#tpu.dimension_semantics<parallel>], iteration_bounds = array<i64: 1>, scalar_prefetch = 0 : i64, scratch_operands = 0 : i64, tpu.core_type = #tpu.core_type<tc>, window_params = [{transform_indices = @transform_0, window_bounds = array<i64: 8, 128>}, {transform_indices = @transform_1, window_bounds = array<i64: 1, 128>}, {pipeline_mode = #tpu.pipeline_mode<synchronous>, transform_indices = @transform_2, window_bounds = array<i64: 56, 8>}, {pipeline_mode = #tpu.pipeline_mode<synchronous>, transform_indices = @transform_3, window_bounds = array<i64: 56, 8>}, {pipeline_mode = #tpu.pipeline_mode<synchronous>, transform_indices = @transform_4, window_bounds = array<i64: 56, 1>}, {pipeline_mode = #tpu.pipeline_mode<synchronous>, transform_indices = @transform_5, window_bounds = array<i64: 3, 56, 56>}, {pipeline_mode = #tpu.pipeline_mode<synchronous>, transform_indices = @transform_6, window_bounds = array<i64: 3, 56, 1>}, {pipeline_mode = #tpu.pipeline_mode<synchronous>, transform_indices = @transform_7, window_bounds = array<i64: 8, 56>}, {pipeline_mode = #tpu.pipeline_mode<synchronous>, transform_indices = @transform_8, window_bounds = array<i64: 8, 1>}, {transform_indices = @transform_9, window_bounds = array<i64: 8, 128>}]} {
    %c0 = arith.constant 0 : index
    %c0_0 = arith.constant 0 : index
    %0 = vector.load %arg1[%c0, %c0_0] : memref<8x128xf32, #tpu.memory_space<vmem>>, vector<8x128xf32>
    %c0_1 = arith.constant 0 : index
    %c0_2 = arith.constant 0 : index
    %1 = vector.load %arg5[%c0_1, %c0_2] : memref<56x1xf32, #tpu.memory_space<vmem>>, vector<56x1xf32>
    %c0_3 = arith.constant 0 : index
    %c0_4 = arith.constant 0 : index
    %2 = vector.load %arg3[%c0_3, %c0_4] : memref<56x8xf32, #tpu.memory_space<vmem>>, vector<56x8xf32>
    %cst = arith.constant dense<0.000000e+00> : vector<56x128xf32>
    %3 = tpu.matmul %2, %0, %cst {dimension_numbers = #tpu.dot_dimension_numbers<[1], [0], [0], [1], [0, 0, 1, 1], [], []>} : vector<56x8xf32>, vector<8x128xf32>, vector<56x128xf32> -> vector<56x128xf32>
    %4 = vector.broadcast %1 : vector<56x1xf32> to vector<56x128xf32>
    %5 = arith.addf %3, %4 : vector<56x128xf32>
    %c0_5 = arith.constant 0 : index
    %c0_6 = arith.constant 0 : index
    %6 = vector.load %arg4[%c0_5, %c0_6] : memref<56x8xf32, #tpu.memory_space<vmem>>, vector<56x8xf32>
    %cst_7 = arith.constant dense<0.000000e+00> : vector<56x128xf32>
    %7 = tpu.matmul %6, %0, %cst_7 {dimension_numbers = #tpu.dot_dimension_numbers<[1], [0], [0], [1], [0, 0, 1, 1], [], []>} : vector<56x8xf32>, vector<8x128xf32>, vector<56x128xf32> -> vector<56x128xf32>
    %8 = vector.broadcast %1 : vector<56x1xf32> to vector<56x128xf32>
    %9 = arith.addf %7, %8 : vector<56x128xf32>
    %10 = tpu.concatenate %5, %9 in 1 : vector<56x128xf32>, vector<56x128xf32> -> vector<56x256xf32>
    %cst_8 = arith.constant 0.000000e+00 : f32
    %11 = vector.broadcast %cst_8 : f32 to vector<56x256xf32>
    %12 = arith.maximumf %10, %11 : vector<56x256xf32>
    %c0_9 = arith.constant 0 : index
    %c0_10 = arith.constant 0 : index
    %c0_11 = arith.constant 0 : index
    %13 = vector.load %arg6[%c0_9, %c0_10, %c0_11] : memref<3x56x56xf32, #tpu.memory_space<vmem>>, vector<1x56x56xf32>
    %14 = vector.shape_cast %13 : vector<1x56x56xf32> to vector<56x56xf32>
    %cst_12 = arith.constant dense<0.000000e+00> : vector<56x256xf32>
    %15 = tpu.matmul %14, %12, %cst_12 {dimension_numbers = #tpu.dot_dimension_numbers<[1], [0], [0], [1], [0, 0, 1, 1], [], []>} : vector<56x56xf32>, vector<56x256xf32>, vector<56x256xf32> -> vector<56x256xf32>
    %c0_13 = arith.constant 0 : index
    %c0_14 = arith.constant 0 : index
    %c0_15 = arith.constant 0 : index
    %16 = vector.load %arg7[%c0_13, %c0_14, %c0_15] : memref<3x56x1xf32, #tpu.memory_space<vmem>>, vector<1x56x1xf32>
    %17 = vector.shape_cast %16 : vector<1x56x1xf32> to vector<56x1xf32>
    %18 = vector.broadcast %17 : vector<56x1xf32> to vector<56x256xf32>
    %19 = arith.addf %15, %18 : vector<56x256xf32>
    %cst_16 = arith.constant 0.000000e+00 : f32
    %20 = vector.broadcast %cst_16 : f32 to vector<56x256xf32>
    %21 = arith.maximumf %19, %20 : vector<56x256xf32>
    %c1 = arith.constant 1 : index
    %c0_17 = arith.constant 0 : index
    %c0_18 = arith.constant 0 : index
    %22 = vector.load %arg6[%c1, %c0_17, %c0_18] : memref<3x56x56xf32, #tpu.memory_space<vmem>>, vector<1x56x56xf32>
    %23 = vector.shape_cast %22 : vector<1x56x56xf32> to vector<56x56xf32>
    %cst_19 = arith.constant dense<0.000000e+00> : vector<56x256xf32>
    %24 = tpu.matmul %23, %21, %cst_19 {dimension_numbers = #tpu.dot_dimension_numbers<[1], [0], [0], [1], [0, 0, 1, 1], [], []>} : vector<56x56xf32>, vector<56x256xf32>, vector<56x256xf32> -> vector<56x256xf32>
    %c1_20 = arith.constant 1 : index
    %c0_21 = arith.constant 0 : index
    %c0_22 = arith.constant 0 : index
    %25 = vector.load %arg7[%c1_20, %c0_21, %c0_22] : memref<3x56x1xf32, #tpu.memory_space<vmem>>, vector<1x56x1xf32>
    %26 = vector.shape_cast %25 : vector<1x56x1xf32> to vector<56x1xf32>
    %27 = vector.broadcast %26 : vector<56x1xf32> to vector<56x256xf32>
    %28 = arith.addf %24, %27 : vector<56x256xf32>
    %cst_23 = arith.constant 0.000000e+00 : f32
    %29 = vector.broadcast %cst_23 : f32 to vector<56x256xf32>
    %30 = arith.maximumf %28, %29 : vector<56x256xf32>
    %c2 = arith.constant 2 : index
    %c0_24 = arith.constant 0 : index
    %c0_25 = arith.constant 0 : index
    %31 = vector.load %arg6[%c2, %c0_24, %c0_25] : memref<3x56x56xf32, #tpu.memory_space<vmem>>, vector<1x56x56xf32>
    %32 = vector.shape_cast %31 : vector<1x56x56xf32> to vector<56x56xf32>
    %cst_26 = arith.constant dense<0.000000e+00> : vector<56x256xf32>
    %33 = tpu.matmul %32, %30, %cst_26 {dimension_numbers = #tpu.dot_dimension_numbers<[1], [0], [0], [1], [0, 0, 1, 1], [], []>} : vector<56x56xf32>, vector<56x256xf32>, vector<56x256xf32> -> vector<56x256xf32>
    %c2_27 = arith.constant 2 : index
    %c0_28 = arith.constant 0 : index
    %c0_29 = arith.constant 0 : index
    %34 = vector.load %arg7[%c2_27, %c0_28, %c0_29] : memref<3x56x1xf32, #tpu.memory_space<vmem>>, vector<1x56x1xf32>
    %35 = vector.shape_cast %34 : vector<1x56x1xf32> to vector<56x1xf32>
    %36 = vector.broadcast %35 : vector<56x1xf32> to vector<56x256xf32>
    %37 = arith.addf %33, %36 : vector<56x256xf32>
    %cst_30 = arith.constant 0.000000e+00 : f32
    %38 = vector.broadcast %cst_30 : f32 to vector<56x256xf32>
    %39 = arith.maximumf %37, %38 : vector<56x256xf32>
    %c0_31 = arith.constant 0 : index
    %c0_32 = arith.constant 0 : index
    %40 = vector.load %arg8[%c0_31, %c0_32] : memref<8x56xf32, #tpu.memory_space<vmem>>, vector<8x56xf32>
    %cst_33 = arith.constant dense<0.000000e+00> : vector<8x256xf32>
    %41 = tpu.matmul %40, %39, %cst_33 {dimension_numbers = #tpu.dot_dimension_numbers<[1], [0], [0], [1], [0, 0, 1, 1], [], []>} : vector<8x56xf32>, vector<56x256xf32>, vector<8x256xf32> -> vector<8x256xf32>
    %c0_34 = arith.constant 0 : index
    %c0_35 = arith.constant 0 : index
    %42 = vector.load %arg9[%c0_34, %c0_35] : memref<8x1xf32, #tpu.memory_space<vmem>>, vector<8x1xf32>
    %43 = vector.broadcast %42 : vector<8x1xf32> to vector<8x256xf32>
    %44 = arith.addf %41, %43 : vector<8x256xf32>
    %c0_36 = arith.constant 0 : index
    %c0_37 = arith.constant 0 : index
    %45 = vector.load %arg2[%c0_36, %c0_37] : memref<1x128xf32, #tpu.memory_space<vmem>>, vector<1x128xf32>
    %cst_38 = arith.constant 1.000000e+00 : f32
    %46 = vector.broadcast %cst_38 : f32 to vector<1x128xf32>
    %47 = arith.subf %46, %45 : vector<1x128xf32>
    %48 = vector.extract_strided_slice %44 {offsets = [0, 0], sizes = [4, 128], strides = [1, 1]} : vector<8x256xf32> to vector<4x128xf32>
    %49 = vector.extract_strided_slice %44 {offsets = [4, 0], sizes = [4, 128], strides = [1, 1]} : vector<8x256xf32> to vector<4x128xf32>
    %50 = vector.extract_strided_slice %44 {offsets = [0, 128], sizes = [4, 128], strides = [1, 1]} : vector<8x256xf32> to vector<4x128xf32>
    %51 = vector.extract_strided_slice %44 {offsets = [4, 128], sizes = [4, 128], strides = [1, 1]} : vector<8x256xf32> to vector<4x128xf32>
    %52 = arith.negf %48 : vector<4x128xf32>
    %53 = math.exp %52 : vector<4x128xf32>
    %cst_39 = arith.constant 1.000000e+00 : f32
    %54 = vector.broadcast %cst_39 : f32 to vector<4x128xf32>
    %55 = arith.addf %54, %53 : vector<4x128xf32>
    %56 = arith.divf %54, %55 : vector<4x128xf32>
    %57 = vector.broadcast %45 : vector<1x128xf32> to vector<4x128xf32>
    %58 = arith.mulf %57, %56 : vector<4x128xf32>
    %59 = arith.negf %49 : vector<4x128xf32>
    %60 = math.exp %59 : vector<4x128xf32>
    %cst_40 = arith.constant 1.000000e+00 : f32
    %61 = vector.broadcast %cst_40 : f32 to vector<4x128xf32>
    %62 = arith.addf %61, %60 : vector<4x128xf32>
    %63 = arith.divf %61, %62 : vector<4x128xf32>
    %64 = vector.broadcast %47 : vector<1x128xf32> to vector<4x128xf32>
    %65 = arith.mulf %64, %63 : vector<4x128xf32>
    %66 = arith.subf %58, %65 : vector<4x128xf32>
    %67 = arith.negf %50 : vector<4x128xf32>
    %68 = math.exp %67 : vector<4x128xf32>
    %cst_41 = arith.constant 1.000000e+00 : f32
    %69 = vector.broadcast %cst_41 : f32 to vector<4x128xf32>
    %70 = arith.addf %69, %68 : vector<4x128xf32>
    %71 = arith.divf %69, %70 : vector<4x128xf32>
    %72 = vector.broadcast %47 : vector<1x128xf32> to vector<4x128xf32>
    %73 = arith.mulf %72, %71 : vector<4x128xf32>
    %74 = arith.negf %51 : vector<4x128xf32>
    %75 = math.exp %74 : vector<4x128xf32>
    %cst_42 = arith.constant 1.000000e+00 : f32
    %76 = vector.broadcast %cst_42 : f32 to vector<4x128xf32>
    %77 = arith.addf %76, %75 : vector<4x128xf32>
    %78 = arith.divf %76, %77 : vector<4x128xf32>
    %79 = vector.broadcast %45 : vector<1x128xf32> to vector<4x128xf32>
    %80 = arith.mulf %79, %78 : vector<4x128xf32>
    %81 = arith.subf %73, %80 : vector<4x128xf32>
    %82 = tpu.concatenate %66, %81 in 0 : vector<4x128xf32>, vector<4x128xf32> -> vector<8x128xf32>
    %c0_43 = arith.constant 0 : index
    %c0_44 = arith.constant 0 : index
    %83 = vector.load %arg10[%c0_43, %c0_44] : memref<8x128xf32, #tpu.memory_space<vmem>>, vector<8x128xf32>
    tpu.vector_store %arg10[%c0_43, %c0_44], %82 {strides = array<i32>} : memref<8x128xf32, #tpu.memory_space<vmem>>, vector<8x128xf32>,
    return
  }
  func.func @transform_0(%arg0: i32) -> (i32, i32) {
    %c0_i32 = arith.constant 0 : i32
    %c0_i32_0 = arith.constant 0 : i32
    return %c0_i32, %arg0 : i32, i32
  }
  func.func @transform_1(%arg0: i32) -> (i32, i32) {
    %c0_i32 = arith.constant 0 : i32
    %c0_i32_0 = arith.constant 0 : i32
    return %c0_i32, %arg0 : i32, i32
  }
  func.func @transform_2(%arg0: i32) -> (i32, i32) {
    %c0_i32 = arith.constant 0 : i32
    %c0_i32_0 = arith.constant 0 : i32
    %c0_i32_1 = arith.constant 0 : i32
    return %c0_i32, %c0_i32_0 : i32, i32
  }
  func.func @transform_3(%arg0: i32) -> (i32, i32) {
    %c0_i32 = arith.constant 0 : i32
    %c0_i32_0 = arith.constant 0 : i32
    %c0_i32_1 = arith.constant 0 : i32
    return %c0_i32, %c0_i32_0 : i32, i32
  }
  func.func @transform_4(%arg0: i32) -> (i32, i32) {
    %c0_i32 = arith.constant 0 : i32
    %c0_i32_0 = arith.constant 0 : i32
    %c0_i32_1 = arith.constant 0 : i32
    return %c0_i32, %c0_i32_0 : i32, i32
  }
  func.func @transform_5(%arg0: i32) -> (i32, i32, i32) {
    %c0_i32 = arith.constant 0 : i32
    %c0_i32_0 = arith.constant 0 : i32
    %c0_i32_1 = arith.constant 0 : i32
    %c0_i32_2 = arith.constant 0 : i32
    return %c0_i32, %c0_i32_0, %c0_i32_1 : i32, i32, i32
  }
  func.func @transform_6(%arg0: i32) -> (i32, i32, i32) {
    %c0_i32 = arith.constant 0 : i32
    %c0_i32_0 = arith.constant 0 : i32
    %c0_i32_1 = arith.constant 0 : i32
    %c0_i32_2 = arith.constant 0 : i32
    return %c0_i32, %c0_i32_0, %c0_i32_1 : i32, i32, i32
  }
  func.func @transform_7(%arg0: i32) -> (i32, i32) {
    %c0_i32 = arith.constant 0 : i32
    %c0_i32_0 = arith.constant 0 : i32
    %c0_i32_1 = arith.constant 0 : i32
    return %c0_i32, %c0_i32_0 : i32, i32
  }
  func.func @transform_8(%arg0: i32) -> (i32, i32) {
    %c0_i32 = arith.constant 0 : i32
    %c0_i32_0 = arith.constant 0 : i32
    %c0_i32_1 = arith.constant 0 : i32
    return %c0_i32, %c0_i32_0 : i32, i32
  }
  func.func @transform_9(%arg0: i32) -> (i32, i32) {
    %c0_i32 = arith.constant 0 : i32
    %c0_i32_0 = arith.constant 0 : i32
    return %c0_i32, %arg0 : i32, i32
  }
}

</mosaic_0001>

<llo_original>
// kernel: tpu_custom_call.1
$region0: #{tpu_custom_call.1}
  #allocation0 [shape = 'u32[]', space=smem, size = 0x4, offset = 0x4, fixed_abs, tag = 'smem constant byte address 0x4 - core index']
  #allocation1 [shape = 'u32[144,128]{1,0:T(1,128)}', space=vmem, size = 0x12000, scoped, tag = 'internal scratch']
  %s0 = inlined_call_operand.vmem [shape: f32[8,128], index: 0, kind: input, shape index: {}]
  %s1 = inlined_call_operand.vmem [shape: f32[1,128], index: 1, kind: input, shape index: {}]
  %s2 = inlined_call_operand.vmem [shape: f32[56,8], index: 2, kind: input, shape index: {}]
  %s3 = inlined_call_operand.vmem [shape: f32[56,8], index: 3, kind: input, shape index: {}]
  %s4 = inlined_call_operand.vmem [shape: f32[56,1], index: 4, kind: input, shape index: {}]
  %s5 = inlined_call_operand.vmem [shape: f32[3,56,56], index: 5, kind: input, shape index: {}]
  %s6 = inlined_call_operand.vmem [shape: f32[3,56,1], index: 6, kind: input, shape index: {}]
  %s7 = inlined_call_operand.vmem [shape: f32[8,56], index: 7, kind: input, shape index: {}]
  %s8 = inlined_call_operand.vmem [shape: f32[8,1], index: 8, kind: input, shape index: {}]
  %s9 = inlined_call_operand.hbm [shape: f32[8,128], index: 9, kind: output, shape index: {}]
  %s10 = sld [smem:[#allocation0]]
  $region46: #{tpu_custom_call.1} parent=0
    _
  %s12 = ssub.s32 1, %s10
  %s13 = scalar_select 0, %s12, %s10
  $region1: #{tpu_custom_call.1} parent=0
    #allocation2 [shape = 'u8[4096]{0}', space=vmem, size = 0x1000, scoped, tag = 'output window, operand 0, single buffered']
    #allocation3 [shape = 's32[1]{0}', space=sflag, size = 0x4, scoped, tag = 'scoped memory for tpu_custom_call.1']
    %14 = vsyncpa [#allocation3], 0
    // Predicated region
    $region2: #{tpu_custom_call.1} parent=1 // pred_check
      _
    $region3: #{tpu_custom_call.1} parent=1 // pred_check_branch
      %16 = sbr.rel (0) target = $region5
    $region4: #{tpu_custom_call.1} parent=1 // pred_region
      _
    $region5: #{tpu_custom_call.1} parent=1 // pred_fallthru
      _
    // Predicated region
    $region6: #{tpu_custom_call.1} parent=1 // pred_check
      _
    $region7: #{tpu_custom_call.1} parent=1 // pred_check_branch
      %18 = sbr.rel (0) target = $region9
    $region8: #{tpu_custom_call.1} parent=1 // pred_region
      _
    $region9: #{tpu_custom_call.1} parent=1 // pred_fallthru
      _
    // Predicated region
    $region10: #{tpu_custom_call.1} parent=1 // pred_check
      _
    $region11: #{tpu_custom_call.1} parent=1 // pred_check_branch
      %20 = sbr.rel (0) target = $region13
    $region12: #{tpu_custom_call.1} parent=1 // pred_region
      _
    $region13: #{tpu_custom_call.1} parent=1 // pred_fallthru
      _
    // Predicated region
    $region14: #{tpu_custom_call.1} parent=1 // pred_check
      _
    $region15: #{tpu_custom_call.1} parent=1 // pred_check_branch
      %22 = sbr.rel (0) target = $region17
    $region16: #{tpu_custom_call.1} parent=1 // pred_region
      _
    $region17: #{tpu_custom_call.1} parent=1 // pred_fallthru
      _
    // Predicated region
    $region18: #{tpu_custom_call.1} parent=1 // pred_check
      _
    $region19: #{tpu_custom_call.1} parent=1 // pred_check_branch
      %24 = sbr.rel (0) target = $region21
    $region20: #{tpu_custom_call.1} parent=1 // pred_region
      _
    $region21: #{tpu_custom_call.1} parent=1 // pred_fallthru
      _
    // Predicated region
    $region22: #{tpu_custom_call.1} parent=1 // pred_check
      _
    $region23: #{tpu_custom_call.1} parent=1 // pred_check_branch
      %26 = sbr.rel (0) target = $region25
    $region24: #{tpu_custom_call.1} parent=1 // pred_region
      _
    $region25: #{tpu_custom_call.1} parent=1 // pred_fallthru
      _
    // Predicated region
    $region26: #{tpu_custom_call.1} parent=1 // pred_check
      _
    $region27: #{tpu_custom_call.1} parent=1 // pred_check_branch
      %28 = sbr.rel (0) target = $region29
    $region28: #{tpu_custom_call.1} parent=1 // pred_region
      _
    $region29: #{tpu_custom_call.1} parent=1 // pred_fallthru
      _
    // Predicated region
    $region30: #{tpu_custom_call.1} parent=1 // pred_check
      _
    $region31: #{tpu_custom_call.1} parent=1 // pred_check_branch
      %30 = sbr.rel (0) target = $region33
    $region32: #{tpu_custom_call.1} parent=1 // pred_region
      _
    $region33: #{tpu_custom_call.1} parent=1 // pred_fallthru
      _
    // Predicated region
    $region34: #{tpu_custom_call.1} parent=1 // pred_check
      _
    $region35: #{tpu_custom_call.1} parent=1 // pred_check_branch
      %32 = sbr.rel (0) target = $region37
    $region36: #{tpu_custom_call.1} parent=1 // pred_region
      _
    $region37: #{tpu_custom_call.1} parent=1 // pred_fallthru
      _
    %v33 = vld [vmem:[%s0] sm:$0xff]
    %v34 = vld [vmem:[%s4] sm:$0xff]
    %v35 = vld [vmem:[%s4 + $0x8] sm:$0xff]
    %v36 = vld [vmem:[%s4 + $0x10] sm:$0xff]
    %v37 = vld [vmem:[%s4 + $0x18] sm:$0xff]
    %v38 = vld [vmem:[%s4 + $0x20] sm:$0xff]
    %v39 = vld [vmem:[%s4 + $0x28] sm:$0xff]
    %v40 = vld [vmem:[%s4 + $0x30] sm:$0xff]
    %v41 = vld [vmem:[%s2] sm:$0xff]
    %v42 = vld [vmem:[%s2 + $0x8] sm:$0xff]
    %v43 = vld [vmem:[%s2 + $0x10] sm:$0xff]
    %v44 = vld [vmem:[%s2 + $0x18] sm:$0xff]
    %v45 = vld [vmem:[%s2 + $0x20] sm:$0xff]
    %v46 = vld [vmem:[%s2 + $0x28] sm:$0xff]
    %v47 = vld [vmem:[%s2 + $0x30] sm:$0xff]
    %49 = vset.pattern.permute.xlu0 0
    %50 = vperm.xlu0 %49, %v34
    %v51 = vpop.permute.xlu0 %50
    %54 = vset.pattern.permute.xlu0 0
    %55 = vperm.xlu0 %54, %v35
    %v56 = vpop.permute.xlu0 %55
    %59 = vset.pattern.permute.xlu0 0
    %60 = vperm.xlu0 %59, %v36
    %v61 = vpop.permute.xlu0 %60
    %64 = vset.pattern.permute.xlu0 0
    %65 = vperm.xlu0 %64, %v37
    %v66 = vpop.permute.xlu0 %65
    %69 = vset.pattern.permute.xlu0 0
    %70 = vperm.xlu0 %69, %v38
    %v71 = vpop.permute.xlu0 %70
    %74 = vset.pattern.permute.xlu0 0
    %75 = vperm.xlu0 %74, %v39
    %v76 = vpop.permute.xlu0 %75
    %79 = vset.pattern.permute.xlu0 0
    %80 = vperm.xlu0 %79, %v40
    %v81 = vpop.permute.xlu0 %80
    %vm83 = vcmask 64512
    %v85 = vsel %vm83, %v41, 0
    %v88 = vsel %vm83, %v42, 0
    %v91 = vsel %vm83, %v43, 0
    %v94 = vsel %vm83, %v44, 0
    %v97 = vsel %vm83, %v45, 0
    %v100 = vsel %vm83, %v46, 0
    %v103 = vsel %vm83, %v47, 0
    %105 = vmatprep.subr.mxu0 0.0
    %106 = vmatpush1.msra.mxu0 %v33
    %107 = vmatprep.subr.mxu0 0.0
    %108 = vmatpush1.msra.mxu0 0.0
    %109 = vmatprep.subr.mxu0 0.0
    %110 = vmatpush1.msra.mxu0 0.0
    %111 = vmatprep.subr.mxu0 0.0
    %112 = vmatpush1.msra.mxu0 0.0
    %113 = vmatprep.subr.mxu0 0.0
    %114 = vmatpush1.msra.mxu0 0.0
    %115 = vmatprep.subr.mxu0 0.0
    %116 = vmatpush1.msra.mxu0 0.0
    %117 = vmatprep.subr.mxu0 0.0
    %118 = vmatpush1.msra.mxu0 0.0
    %119 = vmatprep.subr.mxu0 0.0
    %120 = vmatpush1.msra.mxu0 0.0
    %121 = vmatprep.subr.mxu0 0.0
    %122 = vmatpush1.msra.mxu0 0.0
    %123 = vmatprep.subr.mxu0 0.0
    %124 = vmatpush1.msra.mxu0 0.0
    %125 = vmatprep.subr.mxu0 0.0
    %126 = vmatpush1.msra.mxu0 0.0
    %127 = vmatprep.subr.mxu0 0.0
    %128 = vmatpush1.msra.mxu0 0.0
    %129 = vmatprep.subr.mxu0 0.0
    %130 = vmatpush1.msra.mxu0 0.0
    %131 = vmatprep.subr.mxu0 0.0
    %132 = vmatpush1.msra.mxu0 0.0
    %133 = vmatprep.subr.mxu0 0.0
    %134 = vmatpush1.msra.mxu0 0.0
    %135 = vmatprep.subr.mxu0 0.0
    %136 = vmatpush1.msra.mxu0 0.0
    %137 = vmatprep.subr.mxu0 0.0
    %138 = vmatpush1.msra.mxu0 0.0
    %139 = vmatprep.subr.mxu0 0.0
    %140 = vmatpush1.msra.mxu0 0.0
    %141 = vmatprep.subr.mxu0 0.0
    %142 = vmatpush1.msra.mxu0 0.0
    %143 = vmatprep.subr.mxu0 0.0
    %144 = vmatpush1.msra.mxu0 0.0
    %145 = vmatprep.subr.mxu0 0.0
    %146 = vmatpush1.msra.mxu0 0.0
    %147 = vmatprep.subr.mxu0 0.0
    %148 = vmatpush1.msra.mxu0 0.0
    %149 = vmatprep.subr.mxu0 0.0
    %150 = vmatpush1.msra.mxu0 0.0
    %151 = vmatprep.subr.mxu0 0.0
    %152 = vmatpush1.msra.mxu0 0.0
    %153 = vmatprep.subr.mxu0 0.0
    %154 = vmatpush1.msra.mxu0 0.0
    %155 = vmatprep.subr.mxu0 0.0
    %156 = vmatpush1.msra.mxu0 0.0
    %157 = vmatprep.subr.mxu0 0.0
    %158 = vmatpush1.msra.mxu0 0.0
    %159 = vmatprep.subr.mxu0 0.0
    %160 = vmatpush1.msra.mxu0 0.0
    %161 = vmatprep.subr.mxu0 0.0
    %162 = vmatpush1.msra.mxu0 0.0
    %163 = vmatprep.subr.mxu0 0.0
    %164 = vmatpush1.msra.mxu0 0.0
    %165 = vmatprep.subr.mxu0 0.0
    %166 = vmatpush1.msra.mxu0 0.0
    %167 = vmatprep.subr.mxu0 0.0
    %168 = vmatpush1.msra.mxu0 0.0
    %169 = vmatprep.mubr.f32.mxu0 0.0
    %170 = vmatmul.mubr.f32.gmra.mrb[0].mxu0 %v85
    %v171 = vpop.f32.mrb[0].mxu0
    %v172 = vadd.f32 %v51, %v171
    %v173 = vpop.f32.mrb[0].mxu0
    %174 = vmatprep.mubr.f32.mxu0 0.0
    %175 = vmatmul.mubr.f32.gmra.mrb[0].mxu0 %v88
    %v176 = vpop.f32.mrb[0].mxu0
    %v177 = vadd.f32 %v56, %v176
    %v178 = vpop.f32.mrb[0].mxu0
    %179 = vmatprep.mubr.f32.mxu0 0.0
    %180 = vmatmul.mubr.f32.gmra.mrb[0].mxu0 %v91
    %v181 = vpop.f32.mrb[0].mxu0
    %v182 = vadd.f32 %v61, %v181
    %v183 = vpop.f32.mrb[0].mxu0
    %184 = vmatprep.mubr.f32.mxu0 0.0
    %185 = vmatmul.mubr.f32.gmra.mrb[0].mxu0 %v94
    %v186 = vpop.f32.mrb[0].mxu0
    %v187 = vadd.f32 %v66, %v186
    %v188 = vpop.f32.mrb[0].mxu0
    %189 = vmatprep.mubr.f32.mxu0 0.0
    %190 = vmatmul.mubr.f32.gmra.mrb[0].mxu0 %v97
    %v191 = vpop.f32.mrb[0].mxu0
    %v192 = vadd.f32 %v71, %v191
    %v193 = vpop.f32.mrb[0].mxu0
    %194 = vmatprep.mubr.f32.mxu0 0.0
    %195 = vmatmul.mubr.f32.gmra.mrb[0].mxu0 %v100
    %v196 = vpop.f32.mrb[0].mxu0
    %v197 = vadd.f32 %v76, %v196
    %v198 = vpop.f32.mrb[0].mxu0
    %199 = vmatprep.mubr.f32.mxu0 0.0
    %200 = vmatmul.mubr.f32.gmra.mrb[0].mxu0 %v103
    %v201 = vpop.f32.mrb[0].mxu0
    %v202 = vadd.f32 %v81, %v201
    %v203 = vpop.f32.mrb[0].mxu0
    %204 = vdwg.mxu0
    %v205 = vld [vmem:[%s3] sm:$0xff]
    %v206 = vld [vmem:[%s3 + $0x8] sm:$0xff]
    %v207 = vld [vmem:[%s3 + $0x10] sm:$0xff]
    %v208 = vld [vmem:[%s3 + $0x18] sm:$0xff]
    %v209 = vld [vmem:[%s3 + $0x20] sm:$0xff]
    %v210 = vld [vmem:[%s3 + $0x28] sm:$0xff]
    %v211 = vld [vmem:[%s3 + $0x30] sm:$0xff]
    %v213 = vsel %vm83, %v205, 0
    %v216 = vsel %vm83, %v206, 0
    %v219 = vsel %vm83, %v207, 0
    %v222 = vsel %vm83, %v208, 0
    %v225 = vsel %vm83, %v209, 0
    %v228 = vsel %vm83, %v210, 0
    %v231 = vsel %vm83, %v211, 0
    %233 = vmatprep.subr.mxu0 0.0
    %234 = vmatpush1.msra.mxu0 %v33
    %235 = vmatprep.subr.mxu0 0.0
    %236 = vmatpush1.msra.mxu0 0.0
    %237 = vmatprep.subr.mxu0 0.0
    %238 = vmatpush1.msra.mxu0 0.0
    %239 = vmatprep.subr.mxu0 0.0
    %240 = vmatpush1.msra.mxu0 0.0
    %241 = vmatprep.subr.mxu0 0.0
    %242 = vmatpush1.msra.mxu0 0.0
    %243 = vmatprep.subr.mxu0 0.0
    %244 = vmatpush1.msra.mxu0 0.0
    %245 = vmatprep.subr.mxu0 0.0
    %246 = vmatpush1.msra.mxu0 0.0
    %247 = vmatprep.subr.mxu0 0.0
    %248 = vmatpush1.msra.mxu0 0.0
    %249 = vmatprep.subr.mxu0 0.0
    %250 = vmatpush1.msra.mxu0 0.0
    %251 = vmatprep.subr.mxu0 0.0
    %252 = vmatpush1.msra.mxu0 0.0
    %253 = vmatprep.subr.mxu0 0.0
    %254 = vmatpush1.msra.mxu0 0.0
    %255 = vmatprep.subr.mxu0 0.0
    %256 = vmatpush1.msra.mxu0 0.0
    %257 = vmatprep.subr.mxu0 0.0
    %258 = vmatpush1.msra.mxu0 0.0
    %259 = vmatprep.subr.mxu0 0.0
    %260 = vmatpush1.msra.mxu0 0.0
    %261 = vmatprep.subr.mxu0 0.0
    %262 = vmatpush1.msra.mxu0 0.0
    %263 = vmatprep.subr.mxu0 0.0
    %264 = vmatpush1.msra.mxu0 0.0
    %265 = vmatprep.subr.mxu0 0.0
    %266 = vmatpush1.msra.mxu0 0.0
    %267 = vmatprep.subr.mxu0 0.0
    %268 = vmatpush1.msra.mxu0 0.0
    %269 = vmatprep.subr.mxu0 0.0
    %270 = vmatpush1.msra.mxu0 0.0
    %271 = vmatprep.subr.mxu0 0.0
    %272 = vmatpush1.msra.mxu0 0.0
    %273 = vmatprep.subr.mxu0 0.0
    %274 = vmatpush1.msra.mxu0 0.0
    %275 = vmatprep.subr.mxu0 0.0
    %276 = vmatpush1.msra.mxu0 0.0
    %277 = vmatprep.subr.mxu0 0.0
    %278 = vmatpush1.msra.mxu0 0.0
    %279 = vmatprep.subr.mxu0 0.0
    %280 = vmatpush1.msra.mxu0 0.0
    %281 = vmatprep.subr.mxu0 0.0
    %282 = vmatpush1.msra.mxu0 0.0
    %283 = vmatprep.subr.mxu0 0.0
    %284 = vmatpush1.msra.mxu0 0.0
    %285 = vmatprep.subr.mxu0 0.0
    %286 = vmatpush1.msra.mxu0 0.0
    %287 = vmatprep.subr.mxu0 0.0
    %288 = vmatpush1.msra.mxu0 0.0
    %289 = vmatprep.subr.mxu0 0.0
    %290 = vmatpush1.msra.mxu0 0.0
    %291 = vmatprep.subr.mxu0 0.0
    %292 = vmatpush1.msra.mxu0 0.0
    %293 = vmatprep.subr.mxu0 0.0
    %294 = vmatpush1.msra.mxu0 0.0
    %295 = vmatprep.subr.mxu0 0.0
    %296 = vmatpush1.msra.mxu0 0.0
    %297 = vmatprep.mubr.f32.mxu0 0.0
    %298 = vmatmul.mubr.f32.gmra.mrb[0].mxu0 %v213
    %v299 = vpop.f32.mrb[0].mxu0
    %v300 = vadd.f32 %v51, %v299
    %v301 = vpop.f32.mrb[0].mxu0
    %302 = vmatprep.mubr.f32.mxu0 0.0
    %303 = vmatmul.mubr.f32.gmra.mrb[0].mxu0 %v216
    %v304 = vpop.f32.mrb[0].mxu0
    %v305 = vadd.f32 %v56, %v304
    %v306 = vpop.f32.mrb[0].mxu0
    %307 = vmatprep.mubr.f32.mxu0 0.0
    %308 = vmatmul.mubr.f32.gmra.mrb[0].mxu0 %v219
    %v309 = vpop.f32.mrb[0].mxu0
    %v310 = vadd.f32 %v61, %v309
    %v311 = vpop.f32.mrb[0].mxu0
    %312 = vmatprep.mubr.f32.mxu0 0.0
    %313 = vmatmul.mubr.f32.gmra.mrb[0].mxu0 %v222
    %v314 = vpop.f32.mrb[0].mxu0
    %v315 = vadd.f32 %v66, %v314
    %v316 = vpop.f32.mrb[0].mxu0
    %317 = vmatprep.mubr.f32.mxu0 0.0
    %318 = vmatmul.mubr.f32.gmra.mrb[0].mxu0 %v225
    %v319 = vpop.f32.mrb[0].mxu0
    %v320 = vadd.f32 %v71, %v319
    %v321 = vpop.f32.mrb[0].mxu0
    %322 = vmatprep.mubr.f32.mxu0 0.0
    %323 = vmatmul.mubr.f32.gmra.mrb[0].mxu0 %v228
    %v324 = vpop.f32.mrb[0].mxu0
    %v325 = vadd.f32 %v76, %v324
    %v326 = vpop.f32.mrb[0].mxu0
    %327 = vmatprep.mubr.f32.mxu0 0.0
    %328 = vmatmul.mubr.f32.gmra.mrb[0].mxu0 %v231
    %v329 = vpop.f32.mrb[0].mxu0
    %v330 = vadd.f32 %v81, %v329
    %v331 = vpop.f32.mrb[0].mxu0
    %332 = vdwg.mxu0
    %v333 = vmax.f32 %v172, 0.0
    %v334 = vmax.f32 %v300, 0.0
    %v335 = vmax.f32 %v177, 0.0
    %v336 = vmax.f32 %v305, 0.0
    %v337 = vmax.f32 %v182, 0.0
    %v338 = vmax.f32 %v310, 0.0
    %v339 = vmax.f32 %v187, 0.0
    %v340 = vmax.f32 %v315, 0.0
    %v341 = vmax.f32 %v192, 0.0
    %v342 = vmax.f32 %v320, 0.0
    %v343 = vmax.f32 %v197, 0.0
    %v344 = vmax.f32 %v325, 0.0
    %v345 = vmax.f32 %v202, 0.0
    %v346 = vmax.f32 %v330, 0.0
    %v347 = vld [vmem:[%s5] sm:$0xff]
    %v348 = vld [vmem:[%s5 + $0x8] sm:$0xff]
    %v349 = vld [vmem:[%s5 + $0x10] sm:$0xff]
    %v350 = vld [vmem:[%s5 + $0x18] sm:$0xff]
    %v351 = vld [vmem:[%s5 + $0x20] sm:$0xff]
    %v352 = vld [vmem:[%s5 + $0x28] sm:$0xff]
    %v353 = vld [vmem:[%s5 + $0x30] sm:$0xff]
    %v354 = vld [vmem:[%s6] sm:$0xff]
    %v355 = vld [vmem:[%s6 + $0x8] sm:$0xff]
    %v356 = vld [vmem:[%s6 + $0x10] sm:$0xff]
    %v357 = vld [vmem:[%s6 + $0x18] sm:$0xff]
    %v358 = vld [vmem:[%s6 + $0x20] sm:$0xff]
    %v359 = vld [vmem:[%s6 + $0x28] sm:$0xff]
    %v360 = vld [vmem:[%s6 + $0x30] sm:$0xff]
    %362 = vset.pattern.permute.xlu0 0
    %363 = vperm.xlu0 %362, %v354
    %v364 = vpop.permute.xlu0 %363
    %367 = vset.pattern.permute.xlu0 0
    %368 = vperm.xlu0 %367, %v355
    %v369 = vpop.permute.xlu0 %368
    %372 = vset.pattern.permute.xlu0 0
    %373 = vperm.xlu0 %372, %v356
    %v374 = vpop.permute.xlu0 %373
    %377 = vset.pattern.permute.xlu0 0
    %378 = vperm.xlu0 %377, %v357
    %v379 = vpop.permute.xlu0 %378
    %382 = vset.pattern.permute.xlu0 0
    %383 = vperm.xlu0 %382, %v358
    %v384 = vpop.permute.xlu0 %383
    %387 = vset.pattern.permute.xlu0 0
    %388 = vperm.xlu0 %387, %v359
    %v389 = vpop.permute.xlu0 %388
    %392 = vset.pattern.permute.xlu0 0
    %393 = vperm.xlu0 %392, %v360
    %v394 = vpop.permute.xlu0 %393
    %vm396 = vcmask 457728
    %v398 = vsel %vm396, %v347, 0
    %v401 = vsel %vm396, %v348, 0
    %v404 = vsel %vm396, %v349, 0
    %v407 = vsel %vm396, %v350, 0
    %v410 = vsel %vm396, %v351, 0
    %v413 = vsel %vm396, %v352, 0
    %v416 = vsel %vm396, %v353, 0
    %418 = vmatprep.subr.mxu0 %v334
    %419 = vmatpush1.msra.mxu0 %v333
    %420 = vmatprep.subr.mxu0 %v336
    %421 = vmatpush1.msra.mxu0 %v335
    %422 = vmatprep.subr.mxu0 %v338
    %423 = vmatpush1.msra.mxu0 %v337
    %424 = vmatprep.subr.mxu0 %v340
    %425 = vmatpush1.msra.mxu0 %v339
    %426 = vmatprep.subr.mxu0 %v342
    %427 = vmatpush1.msra.mxu0 %v341
    %428 = vmatprep.subr.mxu0 %v344
    %429 = vmatpush1.msra.mxu0 %v343
    %430 = vmatprep.subr.mxu0 %v346
    %431 = vmatpush1.msra.mxu0 %v345
    %432 = vmatprep.subr.mxu0 0.0
    %433 = vmatpush1.msra.mxu0 0.0
    %434 = vmatprep.subr.mxu0 0.0
    %435 = vmatpush1.msra.mxu0 0.0
    %436 = vmatprep.subr.mxu0 0.0
    %437 = vmatpush1.msra.mxu0 0.0
    %438 = vmatprep.subr.mxu0 0.0
    %439 = vmatpush1.msra.mxu0 0.0
    %440 = vmatprep.subr.mxu0 0.0
    %441 = vmatpush1.msra.mxu0 0.0
    %442 = vmatprep.subr.mxu0 0.0
    %443 = vmatpush1.msra.mxu0 0.0
    %444 = vmatprep.subr.mxu0 0.0
    %445 = vmatpush1.msra.mxu0 0.0
    %446 = vmatprep.subr.mxu0 0.0
    %447 = vmatpush1.msra.mxu0 0.0
    %448 = vmatprep.subr.mxu0 0.0
    %449 = vmatpush1.msra.mxu0 0.0
    %450 = vmatprep.subr.mxu0 0.0
    %451 = vmatpush1.msra.mxu0 0.0
    %452 = vmatprep.subr.mxu0 0.0
    %453 = vmatpush1.msra.mxu0 0.0
    %454 = vmatprep.subr.mxu0 0.0
    %455 = vmatpush1.msra.mxu0 0.0
    %456 = vmatprep.subr.mxu0 0.0
    %457 = vmatpush1.msra.mxu0 0.0
    %458 = vmatprep.subr.mxu0 0.0
    %459 = vmatpush1.msra.mxu0 0.0
    %460 = vmatprep.subr.mxu0 0.0
    %461 = vmatpush1.msra.mxu0 0.0
    %462 = vmatprep.subr.mxu0 0.0
    %463 = vmatpush1.msra.mxu0 0.0
    %464 = vmatprep.subr.mxu0 0.0
    %465 = vmatpush1.msra.mxu0 0.0
    %466 = vmatprep.subr.mxu0 0.0
    %467 = vmatpush1.msra.mxu0 0.0
    %468 = vmatprep.subr.mxu0 0.0
    %469 = vmatpush1.msra.mxu0 0.0
    %470 = vmatprep.subr.mxu0 0.0
    %471 = vmatpush1.msra.mxu0 0.0
    %472 = vmatprep.subr.mxu0 0.0
    %473 = vmatpush1.msra.mxu0 0.0
    %474 = vmatprep.subr.mxu0 0.0
    %475 = vmatpush1.msra.mxu0 0.0
    %476 = vmatprep.subr.mxu0 0.0
    %477 = vmatpush1.msra.mxu0 0.0
    %478 = vmatprep.subr.mxu0 0.0
    %479 = vmatpush1.msra.mxu0 0.0
    %480 = vmatprep.subr.mxu0 0.0
    %481 = vmatpush1.msra.mxu0 0.0
    %482 = vmatprep.mubr.f32.mxu0 0.0
    %483 = vmatmul.mubr.f32.gmra.mrb[0].mxu0 %v398
    %v484 = vpop.f32.mrb[0].mxu0
    %v485 = vadd.f32 %v364, %v484
    %v486 = vpop.f32.mrb[0].mxu0
    %v487 = vadd.f32 %v364, %v486
    %488 = vmatprep.mubr.f32.mxu0 0.0
    %489 = vmatmul.mubr.f32.gmra.mrb[0].mxu0 %v401
    %v490 = vpop.f32.mrb[0].mxu0
    %v491 = vadd.f32 %v369, %v490
    %v492 = vpop.f32.mrb[0].mxu0
    %v493 = vadd.f32 %v369, %v492
    %494 = vmatprep.mubr.f32.mxu0 0.0
    %495 = vmatmul.mubr.f32.gmra.mrb[0].mxu0 %v404
    %v496 = vpop.f32.mrb[0].mxu0
    %v497 = vadd.f32 %v374, %v496
    %v498 = vpop.f32.mrb[0].mxu0
    %v499 = vadd.f32 %v374, %v498
    %500 = vmatprep.mubr.f32.mxu0 0.0
    %501 = vmatmul.mubr.f32.gmra.mrb[0].mxu0 %v407
    %v502 = vpop.f32.mrb[0].mxu0
    %v503 = vadd.f32 %v379, %v502
    %v504 = vpop.f32.mrb[0].mxu0
    %v505 = vadd.f32 %v379, %v504
    %506 = vmatprep.mubr.f32.mxu0 0.0
    %507 = vmatmul.mubr.f32.gmra.mrb[0].mxu0 %v410
    %v508 = vpop.f32.mrb[0].mxu0
    %v509 = vadd.f32 %v384, %v508
    %v510 = vpop.f32.mrb[0].mxu0
    %v511 = vadd.f32 %v384, %v510
    %512 = vmatprep.mubr.f32.mxu0 0.0
    %513 = vmatmul.mubr.f32.gmra.mrb[0].mxu0 %v413
    %v514 = vpop.f32.mrb[0].mxu0
    %v515 = vadd.f32 %v389, %v514
    %v516 = vpop.f32.mrb[0].mxu0
    %v517 = vadd.f32 %v389, %v516
    %518 = vmatprep.mubr.f32.mxu0 0.0
    %519 = vmatmul.mubr.f32.gmra.mrb[0].mxu0 %v416
    %v520 = vpop.f32.mrb[0].mxu0
    %v521 = vadd.f32 %v394, %v520
    %v522 = vpop.f32.mrb[0].mxu0
    %v523 = vadd.f32 %v394, %v522
    %524 = vdwg.mxu0
    %v525 = vmax.f32 %v485, 0.0
    %v526 = vmax.f32 %v487, 0.0
    %v527 = vmax.f32 %v491, 0.0
    %v528 = vmax.f32 %v493, 0.0
    %v529 = vmax.f32 %v497, 0.0
    %v530 = vmax.f32 %v499, 0.0
    %v531 = vmax.f32 %v503, 0.0
    %v532 = vmax.f32 %v505, 0.0
    %v533 = vmax.f32 %v509, 0.0
    %v534 = vmax.f32 %v511, 0.0
    %v535 = vmax.f32 %v515, 0.0
    %v536 = vmax.f32 %v517, 0.0
    %v537 = vmax.f32 %v521, 0.0
    %v538 = vmax.f32 %v523, 0.0
    %s539 = scalar_lea.vmem %s5, 56
    %v540 = vld [vmem:[%s539] sm:$0xff]
    %v541 = vld [vmem:[%s539 + $0x8] sm:$0xff]
    %v542 = vld [vmem:[%s539 + $0x10] sm:$0xff]
    %v543 = vld [vmem:[%s539 + $0x18] sm:$0xff]
    %v544 = vld [vmem:[%s539 + $0x20] sm:$0xff]
    %v545 = vld [vmem:[%s539 + $0x28] sm:$0xff]
    %v546 = vld [vmem:[%s539 + $0x30] sm:$0xff]
    %s547 = scalar_lea.vmem %s6, 56
    %v548 = vld [vmem:[%s547] sm:$0xff]
    %v549 = vld [vmem:[%s547 + $0x8] sm:$0xff]
    %v550 = vld [vmem:[%s547 + $0x10] sm:$0xff]
    %v551 = vld [vmem:[%s547 + $0x18] sm:$0xff]
    %v552 = vld [vmem:[%s547 + $0x20] sm:$0xff]
    %v553 = vld [vmem:[%s547 + $0x28] sm:$0xff]
    %v554 = vld [vmem:[%s547 + $0x30] sm:$0xff]
    %556 = vset.pattern.permute.xlu0 0
    %557 = vperm.xlu0 %556, %v548
    %v558 = vpop.permute.xlu0 %557
    %561 = vset.pattern.permute.xlu0 0
    %562 = vperm.xlu0 %561, %v549
    %v563 = vpop.permute.xlu0 %562
    %566 = vset.pattern.permute.xlu0 0
    %567 = vperm.xlu0 %566, %v550
    %v568 = vpop.permute.xlu0 %567
    %571 = vset.pattern.permute.xlu0 0
    %572 = vperm.xlu0 %571, %v551
    %v573 = vpop.permute.xlu0 %572
    %576 = vset.pattern.permute.xlu0 0
    %577 = vperm.xlu0 %576, %v552
    %v578 = vpop.permute.xlu0 %577
    %581 = vset.pattern.permute.xlu0 0
    %582 = vperm.xlu0 %581, %v553
    %v583 = vpop.permute.xlu0 %582
    %586 = vset.pattern.permute.xlu0 0
    %587 = vperm.xlu0 %586, %v554
    %v588 = vpop.permute.xlu0 %587
    %v591 = vsel %vm396, %v540, 0
    %v594 = vsel %vm396, %v541, 0
    %v597 = vsel %vm396, %v542, 0
    %v600 = vsel %vm396, %v543, 0
    %v603 = vsel %vm396, %v544, 0
    %v606 = vsel %vm396, %v545, 0
    %v609 = vsel %vm396, %v546, 0
    %611 = vmatprep.subr.mxu0 %v526
    %612 = vmatpush1.msra.mxu0 %v525
    %613 = vmatprep.subr.mxu0 %v528
    %614 = vmatpush1.msra.mxu0 %v527
    %615 = vmatprep.subr.mxu0 %v530
    %616 = vmatpush1.msra.mxu0 %v529
    %617 = vmatprep.subr.mxu0 %v532
    %618 = vmatpush1.msra.mxu0 %v531
    %619 = vmatprep.subr.mxu0 %v534
    %620 = vmatpush1.msra.mxu0 %v533
    %621 = vmatprep.subr.mxu0 %v536
    %622 = vmatpush1.msra.mxu0 %v535
    %623 = vmatprep.subr.mxu0 %v538
    %624 = vmatpush1.msra.mxu0 %v537
    %625 = vmatprep.subr.mxu0 0.0
    %626 = vmatpush1.msra.mxu0 0.0
    %627 = vmatprep.subr.mxu0 0.0
    %628 = vmatpush1.msra.mxu0 0.0
    %629 = vmatprep.subr.mxu0 0.0
    %630 = vmatpush1.msra.mxu0 0.0
    %631 = vmatprep.subr.mxu0 0.0
    %632 = vmatpush1.msra.mxu0 0.0
    %633 = vmatprep.subr.mxu0 0.0
    %634 = vmatpush1.msra.mxu0 0.0
    %635 = vmatprep.subr.mxu0 0.0
    %636 = vmatpush1.msra.mxu0 0.0
    %637 = vmatprep.subr.mxu0 0.0
    %638 = vmatpush1.msra.mxu0 0.0
    %639 = vmatprep.subr.mxu0 0.0
    %640 = vmatpush1.msra.mxu0 0.0
    %641 = vmatprep.subr.mxu0 0.0
    %642 = vmatpush1.msra.mxu0 0.0
    %643 = vmatprep.subr.mxu0 0.0
    %644 = vmatpush1.msra.mxu0 0.0
    %645 = vmatprep.subr.mxu0 0.0
    %646 = vmatpush1.msra.mxu0 0.0
    %647 = vmatprep.subr.mxu0 0.0
    %648 = vmatpush1.msra.mxu0 0.0
    %649 = vmatprep.subr.mxu0 0.0
    %650 = vmatpush1.msra.mxu0 0.0
    %651 = vmatprep.subr.mxu0 0.0
    %652 = vmatpush1.msra.mxu0 0.0
    %653 = vmatprep.subr.mxu0 0.0
    %654 = vmatpush1.msra.mxu0 0.0
    %655 = vmatprep.subr.mxu0 0.0
    %656 = vmatpush1.msra.mxu0 0.0
    %657 = vmatprep.subr.mxu0 0.0
    %658 = vmatpush1.msra.mxu0 0.0
    %659 = vmatprep.subr.mxu0 0.0
    %660 = vmatpush1.msra.mxu0 0.0
    %661 = vmatprep.subr.mxu0 0.0
    %662 = vmatpush1.msra.mxu0 0.0
    %663 = vmatprep.subr.mxu0 0.0
    %664 = vmatpush1.msra.mxu0 0.0
    %665 = vmatprep.subr.mxu0 0.0
    %666 = vmatpush1.msra.mxu0 0.0
    %667 = vmatprep.subr.mxu0 0.0
    %668 = vmatpush1.msra.mxu0 0.0
    %669 = vmatprep.subr.mxu0 0.0
    %670 = vmatpush1.msra.mxu0 0.0
    %671 = vmatprep.subr.mxu0 0.0
    %672 = vmatpush1.msra.mxu0 0.0
    %673 = vmatprep.subr.mxu0 0.0
    %674 = vmatpush1.msra.mxu0 0.0
    %675 = vmatprep.mubr.f32.mxu0 0.0
    %676 = vmatmul.mubr.f32.gmra.mrb[0].mxu0 %v591
    %v677 = vpop.f32.mrb[0].mxu0
    %v678 = vadd.f32 %v558, %v677
    %v679 = vpop.f32.mrb[0].mxu0
    %v680 = vadd.f32 %v558, %v679
    %681 = vmatprep.mubr.f32.mxu0 0.0
    %682 = vmatmul.mubr.f32.gmra.mrb[0].mxu0 %v594
    %v683 = vpop.f32.mrb[0].mxu0
    %v684 = vadd.f32 %v563, %v683
    %v685 = vpop.f32.mrb[0].mxu0
    %v686 = vadd.f32 %v563, %v685
    %687 = vmatprep.mubr.f32.mxu0 0.0
    %688 = vmatmul.mubr.f32.gmra.mrb[0].mxu0 %v597
    %v689 = vpop.f32.mrb[0].mxu0
    %v690 = vadd.f32 %v568, %v689
    %v691 = vpop.f32.mrb[0].mxu0
    %v692 = vadd.f32 %v568, %v691
    %693 = vmatprep.mubr.f32.mxu0 0.0
    %694 = vmatmul.mubr.f32.gmra.mrb[0].mxu0 %v600
    %v695 = vpop.f32.mrb[0].mxu0
    %v696 = vadd.f32 %v573, %v695
    %v697 = vpop.f32.mrb[0].mxu0
    %v698 = vadd.f32 %v573, %v697
    %699 = vmatprep.mubr.f32.mxu0 0.0
    %700 = vmatmul.mubr.f32.gmra.mrb[0].mxu0 %v603
    %v701 = vpop.f32.mrb[0].mxu0
    %v702 = vadd.f32 %v578, %v701
    %v703 = vpop.f32.mrb[0].mxu0
    %v704 = vadd.f32 %v578, %v703
    %705 = vmatprep.mubr.f32.mxu0 0.0
    %706 = vmatmul.mubr.f32.gmra.mrb[0].mxu0 %v606
    %v707 = vpop.f32.mrb[0].mxu0
    %v708 = vadd.f32 %v583, %v707
    %v709 = vpop.f32.mrb[0].mxu0
    %v710 = vadd.f32 %v583, %v709
    %711 = vmatprep.mubr.f32.mxu0 0.0
    %712 = vmatmul.mubr.f32.gmra.mrb[0].mxu0 %v609
    %v713 = vpop.f32.mrb[0].mxu0
    %v714 = vadd.f32 %v588, %v713
    %v715 = vpop.f32.mrb[0].mxu0
    %v716 = vadd.f32 %v588, %v715
    %717 = vdwg.mxu0
    %v718 = vmax.f32 %v678, 0.0
    %v719 = vmax.f32 %v680, 0.0
    %v720 = vmax.f32 %v684, 0.0
    %v721 = vmax.f32 %v686, 0.0
    %v722 = vmax.f32 %v690, 0.0
    %v723 = vmax.f32 %v692, 0.0
    %v724 = vmax.f32 %v696, 0.0
    %v725 = vmax.f32 %v698, 0.0
    %v726 = vmax.f32 %v702, 0.0
    %v727 = vmax.f32 %v704, 0.0
    %v728 = vmax.f32 %v708, 0.0
    %v729 = vmax.f32 %v710, 0.0
    %v730 = vmax.f32 %v714, 0.0
    %v731 = vmax.f32 %v716, 0.0
    %s732 = scalar_lea.vmem %s5, 112
    %v733 = vld [vmem:[%s732] sm:$0xff]
    %v734 = vld [vmem:[%s732 + $0x8] sm:$0xff]
    %v735 = vld [vmem:[%s732 + $0x10] sm:$0xff]
    %v736 = vld [vmem:[%s732 + $0x18] sm:$0xff]
    %v737 = vld [vmem:[%s732 + $0x20] sm:$0xff]
    %v738 = vld [vmem:[%s732 + $0x28] sm:$0xff]
    %v739 = vld [vmem:[%s732 + $0x30] sm:$0xff]
    %s740 = scalar_lea.vmem %s6, 112
    %v741 = vld [vmem:[%s740] sm:$0xff]
    %v742 = vld [vmem:[%s740 + $0x8] sm:$0xff]
    %v743 = vld [vmem:[%s740 + $0x10] sm:$0xff]
    %v744 = vld [vmem:[%s740 + $0x18] sm:$0xff]
    %v745 = vld [vmem:[%s740 + $0x20] sm:$0xff]
    %v746 = vld [vmem:[%s740 + $0x28] sm:$0xff]
    %v747 = vld [vmem:[%s740 + $0x30] sm:$0xff]
    %749 = vset.pattern.permute.xlu0 0
    %750 = vperm.xlu0 %749, %v741
    %v751 = vpop.permute.xlu0 %750
    %754 = vset.pattern.permute.xlu0 0
    %755 = vperm.xlu0 %754, %v742
    %v756 = vpop.permute.xlu0 %755
    %759 = vset.pattern.permute.xlu0 0
    %760 = vperm.xlu0 %759, %v743
    %v761 = vpop.permute.xlu0 %760
    %764 = vset.pattern.permute.xlu0 0
    %765 = vperm.xlu0 %764, %v744
    %v766 = vpop.permute.xlu0 %765
    %769 = vset.pattern.permute.xlu0 0
    %770 = vperm.xlu0 %769, %v745
    %v771 = vpop.permute.xlu0 %770
    %774 = vset.pattern.permute.xlu0 0
    %775 = vperm.xlu0 %774, %v746
    %v776 = vpop.permute.xlu0 %775
    %779 = vset.pattern.permute.xlu0 0
    %780 = vperm.xlu0 %779, %v747
    %v781 = vpop.permute.xlu0 %780
    %v784 = vsel %vm396, %v733, 0
    %v787 = vsel %vm396, %v734, 0
    %v790 = vsel %vm396, %v735, 0
    %v793 = vsel %vm396, %v736, 0
    %v796 = vsel %vm396, %v737, 0
    %v799 = vsel %vm396, %v738, 0
    %v802 = vsel %vm396, %v739, 0
    %804 = vmatprep.subr.mxu0 %v719
    %805 = vmatpush1.msra.mxu0 %v718
    %806 = vmatprep.subr.mxu0 %v721
    %807 = vmatpush1.msra.mxu0 %v720
    %808 = vmatprep.subr.mxu0 %v723
    %809 = vmatpush1.msra.mxu0 %v722
    %810 = vmatprep.subr.mxu0 %v725
    %811 = vmatpush1.msra.mxu0 %v724
    %812 = vmatprep.subr.mxu0 %v727
    %813 = vmatpush1.msra.mxu0 %v726
    %814 = vmatprep.subr.mxu0 %v729
    %815 = vmatpush1.msra.mxu0 %v728
    %816 = vmatprep.subr.mxu0 %v731
    %817 = vmatpush1.msra.mxu0 %v730
    %818 = vmatprep.subr.mxu0 0.0
    %819 = vmatpush1.msra.mxu0 0.0
    %820 = vmatprep.subr.mxu0 0.0
    %821 = vmatpush1.msra.mxu0 0.0
    %822 = vmatprep.subr.mxu0 0.0
    %823 = vmatpush1.msra.mxu0 0.0
    %824 = vmatprep.subr.mxu0 0.0
    %825 = vmatpush1.msra.mxu0 0.0
    %826 = vmatprep.subr.mxu0 0.0
    %827 = vmatpush1.msra.mxu0 0.0
    %828 = vmatprep.subr.mxu0 0.0
    %829 = vmatpush1.msra.mxu0 0.0
    %830 = vmatprep.subr.mxu0 0.0
    %831 = vmatpush1.msra.mxu0 0.0
    %832 = vmatprep.subr.mxu0 0.0
    %833 = vmatpush1.msra.mxu0 0.0
    %834 = vmatprep.subr.mxu0 0.0
    %835 = vmatpush1.msra.mxu0 0.0
    %836 = vmatprep.subr.mxu0 0.0
    %837 = vmatpush1.msra.mxu0 0.0
    %838 = vmatprep.subr.mxu0 0.0
    %839 = vmatpush1.msra.mxu0 0.0
    %840 = vmatprep.subr.mxu0 0.0
    %841 = vmatpush1.msra.mxu0 0.0
    %842 = vmatprep.subr.mxu0 0.0
    %843 = vmatpush1.msra.mxu0 0.0
    %844 = vmatprep.subr.mxu0 0.0
    %845 = vmatpush1.msra.mxu0 0.0
    %846 = vmatprep.subr.mxu0 0.0
    %847 = vmatpush1.msra.mxu0 0.0
    %848 = vmatprep.subr.mxu0 0.0
    %849 = vmatpush1.msra.mxu0 0.0
    %850 = vmatprep.subr.mxu0 0.0
    %851 = vmatpush1.msra.mxu0 0.0
    %852 = vmatprep.subr.mxu0 0.0
    %853 = vmatpush1.msra.mxu0 0.0
    %854 = vmatprep.subr.mxu0 0.0
    %855 = vmatpush1.msra.mxu0 0.0
    %856 = vmatprep.subr.mxu0 0.0
    %857 = vmatpush1.msra.mxu0 0.0
    %858 = vmatprep.subr.mxu0 0.0
    %859 = vmatpush1.msra.mxu0 0.0
    %860 = vmatprep.subr.mxu0 0.0
    %861 = vmatpush1.msra.mxu0 0.0
    %862 = vmatprep.subr.mxu0 0.0
    %863 = vmatpush1.msra.mxu0 0.0
    %864 = vmatprep.subr.mxu0 0.0
    %865 = vmatpush1.msra.mxu0 0.0
    %866 = vmatprep.subr.mxu0 0.0
    %867 = vmatpush1.msra.mxu0 0.0
    %868 = vmatprep.mubr.f32.mxu0 0.0
    %869 = vmatmul.mubr.f32.gmra.mrb[0].mxu0 %v784
    %v870 = vpop.f32.mrb[0].mxu0
    %v871 = vadd.f32 %v751, %v870
    %v872 = vpop.f32.mrb[0].mxu0
    %v873 = vadd.f32 %v751, %v872
    %874 = vmatprep.mubr.f32.mxu0 0.0
    %875 = vmatmul.mubr.f32.gmra.mrb[0].mxu0 %v787
    %v876 = vpop.f32.mrb[0].mxu0
    %v877 = vadd.f32 %v756, %v876
    %v878 = vpop.f32.mrb[0].mxu0
    %v879 = vadd.f32 %v756, %v878
    %880 = vmatprep.mubr.f32.mxu0 0.0
    %881 = vmatmul.mubr.f32.gmra.mrb[0].mxu0 %v790
    %v882 = vpop.f32.mrb[0].mxu0
    %v883 = vadd.f32 %v761, %v882
    %v884 = vpop.f32.mrb[0].mxu0
    %v885 = vadd.f32 %v761, %v884
    %886 = vmatprep.mubr.f32.mxu0 0.0
    %887 = vmatmul.mubr.f32.gmra.mrb[0].mxu0 %v793
    %v888 = vpop.f32.mrb[0].mxu0
    %v889 = vadd.f32 %v766, %v888
    %v890 = vpop.f32.mrb[0].mxu0
    %v891 = vadd.f32 %v766, %v890
    %892 = vmatprep.mubr.f32.mxu0 0.0
    %893 = vmatmul.mubr.f32.gmra.mrb[0].mxu0 %v796
    %v894 = vpop.f32.mrb[0].mxu0
    %v895 = vadd.f32 %v771, %v894
    %v896 = vpop.f32.mrb[0].mxu0
    %v897 = vadd.f32 %v771, %v896
    %898 = vmatprep.mubr.f32.mxu0 0.0
    %899 = vmatmul.mubr.f32.gmra.mrb[0].mxu0 %v799
    %v900 = vpop.f32.mrb[0].mxu0
    %v901 = vadd.f32 %v776, %v900
    %v902 = vpop.f32.mrb[0].mxu0
    %v903 = vadd.f32 %v776, %v902
    %904 = vmatprep.mubr.f32.mxu0 0.0
    %905 = vmatmul.mubr.f32.gmra.mrb[0].mxu0 %v802
    %v906 = vpop.f32.mrb[0].mxu0
    %v907 = vadd.f32 %v781, %v906
    %v908 = vpop.f32.mrb[0].mxu0
    %v909 = vadd.f32 %v781, %v908
    %910 = vdwg.mxu0
    %v911 = vmax.f32 %v871, 0.0
    %v912 = vmax.f32 %v873, 0.0
    %v913 = vmax.f32 %v877, 0.0
    %v914 = vmax.f32 %v879, 0.0
    %v915 = vmax.f32 %v883, 0.0
    %v916 = vmax.f32 %v885, 0.0
    %v917 = vmax.f32 %v889, 0.0
    %v918 = vmax.f32 %v891, 0.0
    %v919 = vmax.f32 %v895, 0.0
    %v920 = vmax.f32 %v897, 0.0
    %v921 = vmax.f32 %v901, 0.0
    %v922 = vmax.f32 %v903, 0.0
    %v923 = vmax.f32 %v907, 0.0
    %v924 = vmax.f32 %v909, 0.0
    %v925 = vld [vmem:[%s7] sm:$0xff]
    %v926 = vld [vmem:[%s8] sm:$0xff]
    %928 = vset.pattern.permute.xlu0 0
    %929 = vperm.xlu0 %928, %v926
    %v930 = vpop.permute.xlu0 %929
    %v933 = vsel %vm396, %v925, 0
    %935 = vmatprep.subr.mxu0 %v912
    %936 = vmatpush1.msra.mxu0 %v911
    %937 = vmatprep.subr.mxu0 %v914
    %938 = vmatpush1.msra.mxu0 %v913
    %939 = vmatprep.subr.mxu0 %v916
    %940 = vmatpush1.msra.mxu0 %v915
    %941 = vmatprep.subr.mxu0 %v918
    %942 = vmatpush1.msra.mxu0 %v917
    %943 = vmatprep.subr.mxu0 %v920
    %944 = vmatpush1.msra.mxu0 %v919
    %945 = vmatprep.subr.mxu0 %v922
    %946 = vmatpush1.msra.mxu0 %v921
    %947 = vmatprep.subr.mxu0 %v924
    %948 = vmatpush1.msra.mxu0 %v923
    %949 = vmatprep.subr.mxu0 0.0
    %950 = vmatpush1.msra.mxu0 0.0
    %951 = vmatprep.subr.mxu0 0.0
    %952 = vmatpush1.msra.mxu0 0.0
    %953 = vmatprep.subr.mxu0 0.0
    %954 = vmatpush1.msra.mxu0 0.0
    %955 = vmatprep.subr.mxu0 0.0
    %956 = vmatpush1.msra.mxu0 0.0
    %957 = vmatprep.subr.mxu0 0.0
    %958 = vmatpush1.msra.mxu0 0.0
    %959 = vmatprep.subr.mxu0 0.0
    %960 = vmatpush1.msra.mxu0 0.0
    %961 = vmatprep.subr.mxu0 0.0
    %962 = vmatpush1.msra.mxu0 0.0
    %963 = vmatprep.subr.mxu0 0.0
    %964 = vmatpush1.msra.mxu0 0.0
    %965 = vmatprep.subr.mxu0 0.0
    %966 = vmatpush1.msra.mxu0 0.0
    %967 = vmatprep.subr.mxu0 0.0
    %968 = vmatpush1.msra.mxu0 0.0
    %969 = vmatprep.subr.mxu0 0.0
    %970 = vmatpush1.msra.mxu0 0.0
    %971 = vmatprep.subr.mxu0 0.0
    %972 = vmatpush1.msra.mxu0 0.0
    %973 = vmatprep.subr.mxu0 0.0
    %974 = vmatpush1.msra.mxu0 0.0
    %975 = vmatprep.subr.mxu0 0.0
    %976 = vmatpush1.msra.mxu0 0.0
    %977 = vmatprep.subr.mxu0 0.0
    %978 = vmatpush1.msra.mxu0 0.0
    %979 = vmatprep.subr.mxu0 0.0
    %980 = vmatpush1.msra.mxu0 0.0
    %981 = vmatprep.subr.mxu0 0.0
    %982 = vmatpush1.msra.mxu0 0.0
    %983 = vmatprep.subr.mxu0 0.0
    %984 = vmatpush1.msra.mxu0 0.0
    %985 = vmatprep.subr.mxu0 0.0
    %986 = vmatpush1.msra.mxu0 0.0
    %987 = vmatprep.subr.mxu0 0.0
    %988 = vmatpush1.msra.mxu0 0.0
    %989 = vmatprep.subr.mxu0 0.0
    %990 = vmatpush1.msra.mxu0 0.0
    %991 = vmatprep.subr.mxu0 0.0
    %992 = vmatpush1.msra.mxu0 0.0
    %993 = vmatprep.subr.mxu0 0.0
    %994 = vmatpush1.msra.mxu0 0.0
    %995 = vmatprep.subr.mxu0 0.0
    %996 = vmatpush1.msra.mxu0 0.0
    %997 = vmatprep.subr.mxu0 0.0
    %998 = vmatpush1.msra.mxu0 0.0
    %999 = vmatprep.mubr.f32.mxu0 0.0
    %1000 = vmatmul.mubr.f32.gmra.mrb[0].mxu0 %v933
    %v1001 = vpop.f32.mrb[0].mxu0
    %v1002 = vadd.f32 %v930, %v1001
    %v1003 = vpop.f32.mrb[0].mxu0
    %v1004 = vadd.f32 %v930, %v1003
    %1005 = vdwg.mxu0
    %v1006 = vld [vmem:[%s1] sm:$0x1]
    %v1007 = vsub.f32 1.0, %v1006
    %v1008 = vxor.u32 %v1002, 2147483648
    %v1009 = vmul.f32 %v1008, 1.442695
    %v1010 = vpow.pop %v1009
    %v1011 = vadd.f32 %v1010, 1.0
    %v1012 = vrcp.pop %v1011
    %v1013 = vmul.f32 1.0, %v1012
    %v1015 = vlaneseq
    %v1016 = vshrl.u32 %v1015, 7
    %v1017 = vsub.s32 0, %v1016
    %v1018 = vrot.slane %v1006, %v1017
    %v1020 = vmul.f32 %v1018, %v1013
    %v1022 = vlaneseq
    %v1023 = vshrl.u32 %v1022, 7
    %v1024 = vsub.s32 0, %v1023
    %v1025 = vrot.slane %v1007, %v1024
    %v1027 = vmul.f32 %v1025, %v1013
    %v1029 = vrot.slane %v1027, 4
    %v1031 = vsub.f32 %v1020, %v1029
    %v1032 = vxor.u32 %v1004, 2147483648
    %v1033 = vmul.f32 %v1032, 1.442695
    %v1034 = vpow.pop %v1033
    %v1035 = vadd.f32 %v1034, 1.0
    %v1036 = vrcp.pop %v1035
    %v1037 = vmul.f32 1.0, %v1036
    %v1038 = vmul.f32 %v1025, %v1037
    %v1039 = vmul.f32 %v1018, %v1037
    %v1041 = vrot.slane %v1039, 4
    %v1043 = vsub.f32 %v1038, %v1041
    %v1045 = vrot.slane %v1043, 4
    %vm1047 = vcmask 1043456
    %v1048 = vsel %vm1047, %v1031, %v1045
    %1049 = vst [vmem:[#allocation2] sm:$0xff] %v1048
    // Predicated region
    $region38: #{tpu_custom_call.1} parent=1 // pred_check
      _
    $region39: #{tpu_custom_call.1} parent=1 // pred_check_branch
      %1051 = sbr.rel (0) target = $region41
    $region40: #{tpu_custom_call.1} parent=1 // pred_region
      %s1053 = ssub.s32 128, 128
      %1054 = vsyncadd [#allocation3], %s1053
      %s1056 = sshll.u32 [#allocation2], 4
      %s1057 = int_to_ptr.vmem [resolvable:$true] %s1056
      %1059 = dma.vmem_to_hbm [thread:$0]  %s1057, 128, %s9, [#allocation3]
    $region41: #{tpu_custom_call.1} parent=1 // pred_fallthru
      _
    // Predicated region
    $region42: #{tpu_custom_call.1} parent=1 // pred_check
      _
    $region43: #{tpu_custom_call.1} parent=1 // pred_check_branch
      %1061 = sbr.rel (0) target = $region45
    $region44: #{tpu_custom_call.1} parent=1 // pred_region
      %1062 = dma.done [#allocation3], 128
    $region45: #{tpu_custom_call.1} parent=1 // pred_fallthru
      _
    %1063 = vsyncpa [#allocation3], 1

</llo_original>
